<compile_context>
chip_gen: v6e
topology: v6e:2x2x1
jax: 0.10.0
libtpu: 0.0.40
codegen_flags: <defaults>
</compile_context>

<pallas_src>
import jax
import jax.numpy as jnp
from jax.experimental import pallas as pl
from jax.experimental.pallas import tpu as pltpu


def _fused_kernel(x_ref, w_ref, o_ref):
    # x, w, o are (M, N) VMEM tiles with identical layouts.
    # out = x * w - x + 1   (single fused VPU pass, immediates only)
    o_ref[...] = x_ref[...] * w_ref[...] - x_ref[...] + 1.0


@jax.jit
def model_forward(x1, weight, bias):
    # bias only appears in dead / invalid code in the original forward.
    del bias
    B, M, N = x1.shape                      # (1, 2, 2), static under jit
    x2d = x1.reshape(M, N)                  # squeeze the size-1 batch dim

    out2d = pl.pallas_call(
        _fused_kernel,
        out_shape=jax.ShapeDtypeStruct((M, N), x1.dtype),
        in_specs=[
            pl.BlockSpec(memory_space=pltpu.MemorySpace.VMEM),
            pl.BlockSpec(memory_space=pltpu.MemorySpace.VMEM),
        ],
        out_specs=pl.BlockSpec(memory_space=pltpu.MemorySpace.VMEM),
        cost_estimate=pl.CostEstimate(
            flops=2 * M * N,
            transcendentals=0,
            bytes_accessed=3 * M * N * 4,
        ),
    )(x2d, weight)

    return out2d.reshape(B, M, N)


if __name__ == "__main__":
    key = jax.random.PRNGKey(0)
    k_x, k_w, k_b = jax.random.split(key, 3)

    # Input consistent with the module: x1 = torch.randn(1, 2, 2)
    x1 = jax.random.normal(k_x, (1, 2, 2), dtype=jnp.float32)

    # Deterministic nn.Linear(2, 2) init: uniform(-1/sqrt(fan_in), 1/sqrt(fan_in))
    bound = 1.0 / jnp.sqrt(2.0)
    weight = jax.random.uniform(k_w, (2, 2), minval=-bound, maxval=bound,
                                dtype=jnp.float32)
    bias = jax.random.uniform(k_b, (2,), minval=-bound, maxval=bound,
                              dtype=jnp.float32)

    out = model_forward(x1, weight, bias)
    jax.block_until_ready(out)

    # Reference check in plain JAX (the effective PyTorch forward).
    ref = x1 * weight - x1 + 1.0
    assert out.shape == x1.shape, "shape mismatch vs reference"
    assert jnp.allclose(out, ref, atol=1e-6), "mismatch vs reference"

    print("KERNEL_OK")
</pallas_src>

<mosaic_0001>
module attributes {stable_mosaic.version = 11 : i64} {
  func.func @_fused_kernel(%arg0: memref<2x2xf32, #tpu.memory_space<vmem>>, %arg1: memref<2x2xf32, #tpu.memory_space<vmem>>, %arg2: memref<2x2xf32, #tpu.memory_space<vmem>>) attributes {dimension_semantics = [], scalar_prefetch = 0 : i64, scratch_operands = 0 : i64, tpu.core_type = #tpu.core_type<tc>} {
    %c0 = arith.constant 0 : index
    %c0_0 = arith.constant 0 : index
    %0 = vector.load %arg0[%c0, %c0_0] : memref<2x2xf32, #tpu.memory_space<vmem>>, vector<2x2xf32>
    %c0_1 = arith.constant 0 : index
    %c0_2 = arith.constant 0 : index
    %1 = vector.load %arg1[%c0_1, %c0_2] : memref<2x2xf32, #tpu.memory_space<vmem>>, vector<2x2xf32>
    %2 = arith.mulf %0, %1 : vector<2x2xf32>
    %c0_3 = arith.constant 0 : index
    %c0_4 = arith.constant 0 : index
    %3 = vector.load %arg0[%c0_3, %c0_4] : memref<2x2xf32, #tpu.memory_space<vmem>>, vector<2x2xf32>
    %4 = arith.subf %2, %3 : vector<2x2xf32>
    %cst = arith.constant 1.000000e+00 : f32
    %5 = vector.broadcast %cst : f32 to vector<2x2xf32>
    %6 = arith.addf %4, %5 : vector<2x2xf32>
    %c0_5 = arith.constant 0 : index
    %c0_6 = arith.constant 0 : index
    %7 = vector.load %arg2[%c0_5, %c0_6] : memref<2x2xf32, #tpu.memory_space<vmem>>, vector<2x2xf32>
    tpu.vector_store %arg2[%c0_5, %c0_6], %6 {strides = array<i32>} : memref<2x2xf32, #tpu.memory_space<vmem>>, vector<2x2xf32>,
    return
  }
}

</mosaic_0001>

<llo_original>
// kernel: model_forward.1
$region0: #{model_forward.1}
  #allocation0 [shape = 'u32[]', space=smem, size = 0x4, offset = 0x4, fixed_abs, tag = 'smem constant byte address 0x4 - core index']
  #allocation1 [shape = 'u32[144,128]{1,0:T(1,128)}', space=vmem, size = 0x12000, scoped, tag = 'internal scratch']
  %s0 = inlined_call_operand.hbm [shape: f32[2,2], index: 0, kind: input, shape index: {}]
  %s1 = inlined_call_operand.vmem [shape: f32[2,2], index: 1, kind: input, shape index: {}]
  %s2 = inlined_call_operand.hbm [shape: f32[2,2], index: 2, kind: output, shape index: {}]
  %s3 = sld [smem:[#allocation0]]
  $region22: #{model_forward.1} parent=0
    _
  %s5 = ssub.s32 1, %s3
  %s6 = scalar_select 0, %s5, %s3
  $region1: #{model_forward.1} parent=0
    #allocation2 [shape = 'u8[1024]{0}', space=vmem, size = 0x400, scoped, tag = 'input window, operand 0, single buffered']
    #allocation3 [shape = 's32[1]{0}', space=sflag, size = 0x4, scoped, tag = 'scoped memory for model_forward.1']
    #allocation4 [shape = 's32[1]{0}', space=sflag, size = 0x4, scoped, tag = 'scoped memory for model_forward.1']
    #allocation5 [shape = 'u8[1024]{0}', space=vmem, size = 0x400, scoped, tag = 'output window, operand 0, single buffered']
    %7 = vsyncpa [#allocation3], 0
    %8 = vsyncpa [#allocation4], 0
    // Predicated region
    $region2: #{model_forward.1} parent=1 // pred_check
      _
    $region3: #{model_forward.1} parent=1 // pred_check_branch
      %10 = sbr.rel (0) target = $region5
    $region4: #{model_forward.1} parent=1 // pred_region
      %s12 = ssub.s32 32, 32
      %13 = vsyncadd [#allocation3], %s12
      %s15 = sshll.u32 [#allocation2], 4
      %s16 = int_to_ptr.vmem [resolvable:$true] %s15
      %18 = dma.hbm_to_vmem [thread:$0]  %s0, 32, %s16, [#allocation3]
    $region5: #{model_forward.1} parent=1 // pred_fallthru
      _
    // Predicated region
    $region6: #{model_forward.1} parent=1 // pred_check
      _
    $region7: #{model_forward.1} parent=1 // pred_check_branch
      %20 = sbr.rel (0) target = $region9
    $region8: #{model_forward.1} parent=1 // pred_region
      _
    $region9: #{model_forward.1} parent=1 // pred_fallthru
      _
    // Predicated region
    $region10: #{model_forward.1} parent=1 // pred_check
      _
    $region11: #{model_forward.1} parent=1 // pred_check_branch
      %22 = sbr.rel (0) target = $region13
    $region12: #{model_forward.1} parent=1 // pred_region
      %23 = dma.done [#allocation3], 32
    $region13: #{model_forward.1} parent=1 // pred_fallthru
      _
    %v24 = vld [vmem:[#allocation2] sm:$0x3]
    %v25 = vld [vmem:[%s1] sm:$0x3]
    %v26 = vmul.f32 %v24, %v25
    %v27 = vsub.f32 %v26, %v24
    %v28 = vadd.f32 %v27, 1.0
    %vm29 = vcmask 9216
    %30 = vst.msk [vmem:[#allocation5] sm:$0x3] %vm29, %v28
    // Predicated region
    $region14: #{model_forward.1} parent=1 // pred_check
      _
    $region15: #{model_forward.1} parent=1 // pred_check_branch
      %32 = sbr.rel (0) target = $region17
    $region16: #{model_forward.1} parent=1 // pred_region
      %s34 = ssub.s32 32, 32
      %35 = vsyncadd [#allocation4], %s34
      %s37 = sshll.u32 [#allocation5], 4
      %s38 = int_to_ptr.vmem [resolvable:$true] %s37
      %40 = dma.vmem_to_hbm [thread:$0]  %s38, 32, %s2, [#allocation4]
    $region17: #{model_forward.1} parent=1 // pred_fallthru
      _
    // Predicated region
    $region18: #{model_forward.1} parent=1 // pred_check
      _
    $region19: #{model_forward.1} parent=1 // pred_check_branch
      %42 = sbr.rel (0) target = $region21
    $region20: #{model_forward.1} parent=1 // pred_region
      %43 = dma.done [#allocation4], 32
    $region21: #{model_forward.1} parent=1 // pred_fallthru
      _
    %44 = vsyncpa [#allocation3], 1
    %45 = vsyncpa [#allocation4], 1

</llo_original>
